<compile_context>
chip_gen: v6e
topology: v6e:2x2x1
jax: 0.10.0
libtpu: 0.0.40
codegen_flags: <defaults>
</compile_context>

<pallas_src>
import functools

import jax
import jax.numpy as jnp
from jax import lax
from jax.experimental import pallas as pl
from jax.experimental.pallas import tpu as pltpu

_LANES = 128
_MAX_TILE_ROWS = 2048   # 2048 x 128 f32 = 1 MiB per input per pipeline buffer


def _round_up(x, m):
    return ((x + m - 1) // m) * m


def _sublane_min(dtype):
    # Minimum sublane tile for the dtype's packing (f32: 8, bf16/f16: 16, 8-bit: 32).
    return {4: 8, 2: 16, 1: 32}.get(jnp.dtype(dtype).itemsize, 8)


def _as_kernel_dtype(x):
    if x.dtype in (jnp.dtype(jnp.float32), jnp.dtype(jnp.bfloat16), jnp.dtype(jnp.float16)):
        return x
    return x.astype(jnp.float32)


def _fold_to_vreg(x):
    # (tile_rows, 128) f32 -> (1, 8, 128) per-lane partial sums (sublane-aligned
    # reshape + vreg adds only; no cross-lane reduction).
    return jnp.sum(x.reshape(-1, 8, _LANES), axis=0, keepdims=True)


def _dre_loss_kernel(r_ref, t_ref, kl_ref, pw_ref, *,
                     n_valid, tile_rows, tiles_per_core):
    c = pl.program_id(0)                       # core-split index ("parallel")
    i = pl.program_id(1)                       # row-tile index ("arbitrary")
    tile_idx = c * tiles_per_core + i          # logical (unclamped) tile index
    tile_elems = tile_rows * _LANES

    @pl.when(i == 0)
    def _init():
        kl_ref[...] = jnp.zeros_like(kl_ref)
        pw_ref[...] = jnp.zeros_like(pw_ref)

    r = r_ref[...].astype(jnp.float32)         # (tile_rows, 128)
    t = t_ref[...].astype(jnp.float32)

    w = t * jnp.log(r)                         # t * log(r)
    p = jnp.exp(w)                             # r ** t  (valid since r > 0)

    # Does this tile contain any flat index >= n_valid (ragged boundary block,
    # pad tail, or a fully-out-of-range overflow tile on the second core)?
    needs_mask = (tile_idx + 1) * tile_elems > n_valid

    @pl.when(jnp.logical_not(needs_mask))
    def _fast():                               # interior tiles: no mask work
        kl_ref[...] += _fold_to_vreg(w)
        pw_ref[...] += _fold_to_vreg(p)

    @pl.when(needs_mask)
    def _masked():                             # boundary/overflow tiles only
        base = tile_idx * tile_elems
        rows = lax.broadcasted_iota(jnp.int32, w.shape, 0)
        lanes = lax.broadcasted_iota(jnp.int32, w.shape, 1)
        valid = (base + rows * _LANES + lanes) < n_valid
        zero = jnp.zeros_like(w)
        kl_ref[...] += _fold_to_vreg(jnp.where(valid, w, zero))
        pw_ref[...] += _fold_to_vreg(jnp.where(valid, p, zero))


def dre_loss(r, t, lambd, *, max_tile_rows=_MAX_TILE_ROWS, num_core_splits=2):
    """r, t: same-shape arrays (r > 0). Returns scalar f32 loss."""
    assert r.shape == t.shape, (r.shape, t.shape)
    r = _as_kernel_dtype(r)
    t = _as_kernel_dtype(t)

    n = r.size
    r_flat = r.reshape(-1)
    t_flat = t.reshape(-1)

    sublane = max(_sublane_min(r_flat.dtype), _sublane_min(t_flat.dtype))
    rows = pl.cdiv(n, _LANES)
    tile_rows = min(_round_up(max_tile_rows, sublane), _round_up(rows, sublane))
    padded_rows = max(rows, tile_rows)          # pad only if input < one tile
    padded_n = padded_rows * _LANES

    def to_2d(x, fill):
        if padded_n != n:
            # Rare path (n % 128 != 0 or tiny input). Pad values are masked out
            # in-kernel anyway; r=1/t=0 just keeps log/exp finite.
            x = jnp.pad(x, (0, padded_n - n), constant_values=fill)
        return x.reshape(padded_rows, _LANES)   # free reshape for contiguous data

    r2 = to_2d(r_flat, 1.0)
    t2 = to_2d(t_flat, 0.0)

    num_tiles = pl.cdiv(padded_rows, tile_rows)
    tiles_per_core = pl.cdiv(num_tiles, num_core_splits)
    last_block = num_tiles - 1

    def in_map(c, i):
        # Clamp so an overflow tile on the second core re-reads the last valid
        # block; its contribution is fully masked out inside the kernel.
        return (jnp.minimum(c * tiles_per_core + i, last_block), 0)

    kernel = functools.partial(_dre_loss_kernel, n_valid=n, tile_rows=tile_rows,
                               tiles_per_core=tiles_per_core)

    kl_parts, pw_parts = pl.pallas_call(
        kernel,
        out_shape=(jax.ShapeDtypeStruct((num_core_splits, 8, _LANES), jnp.float32),
                   jax.ShapeDtypeStruct((num_core_splits, 8, _LANES), jnp.float32)),
        grid_spec=pltpu.PrefetchScalarGridSpec(
            num_scalar_prefetch=0,
            grid=(num_core_splits, tiles_per_core),
            in_specs=[
                pl.BlockSpec((tile_rows, _LANES), in_map),   # r
                pl.BlockSpec((tile_rows, _LANES), in_map),   # t
            ],
            out_specs=[
                pl.BlockSpec((1, 8, _LANES), lambda c, i: (c, 0, 0)),  # sum t*log(r)
                pl.BlockSpec((1, 8, _LANES), lambda c, i: (c, 0, 0)),  # sum r**t
            ],
        ),
        compiler_params=pltpu.CompilerParams(
            dimension_semantics=("parallel", "arbitrary"),
            vmem_limit_bytes=32 * 1024 * 1024,
        ),
    )(r2, t2)

    # Tiny scalar epilogue in plain XLA: combine per-core / per-lane partials.
    mean_kl = jnp.sum(kl_parts) / n
    mean_pw = jnp.sum(pw_parts) / n
    return mean_kl + jnp.float32(lambd) * jnp.abs(mean_pw - 1.0)


def _reference(r, t, lambd):
    rf = r.astype(jnp.float32)
    tf = t.astype(jnp.float32)
    loss_kl = jnp.mean(tf * jnp.log(rf))
    loss_cons = jnp.abs(jnp.mean(jnp.power(rf, tf)) - 1.0)   # 2-norm of a scalar == abs
    return loss_kl + lambd * loss_cons


if __name__ == "__main__":
    key = jax.random.PRNGKey(0)
    k1, k2, k3, k4 = jax.random.split(key, 4)
    lambd = 0.1

    # Case 1: n = 264 (not a multiple of 128) -> exercises the small-pad +
    # tail-mask path and the fully-masked overflow tile on the second core split.
    r1 = jax.random.uniform(k1, (8, 33), dtype=jnp.float32, minval=0.5, maxval=2.0)
    t1 = jax.random.uniform(k2, (8, 33), dtype=jnp.float32, minval=-1.0, maxval=1.0)
    res1 = dre_loss(r1, t1, lambd)
    jax.block_until_ready(res1)
    ref1 = _reference(r1, t1, lambd)
    assert jnp.allclose(res1, ref1, rtol=1e-5, atol=1e-5), (res1, ref1)

    # Case 2: n = 2560 (multiple of 128, zero-copy path) with a tiny tile size ->
    # multi-tile accumulation, ragged final block (garbage lanes masked), and the
    # two-way core split with one fully-masked overflow tile.
    r2 = jax.random.uniform(k3, (64, 40), dtype=jnp.float32, minval=0.5, maxval=2.0)
    t2 = jax.random.uniform(k4, (64, 40), dtype=jnp.float32, minval=-1.0, maxval=1.0)
    res2 = dre_loss(r2, t2, lambd, max_tile_rows=8)
    jax.block_until_ready(res2)
    ref2 = _reference(r2, t2, lambd)
    assert jnp.allclose(res2, ref2, rtol=1e-5, atol=1e-5), (res2, ref2)

    _ = float(res1)  # .item() equivalent
    print("KERNEL_OK")
</pallas_src>

<mosaic_0001>
module attributes {stable_mosaic.version = 11 : i64} {
  func.func @_dre_loss_kernel(%arg0: i32, %arg1: i32, %arg2: memref<8x128xf32, #tpu.memory_space<vmem>>, %arg3: memref<8x128xf32, #tpu.memory_space<vmem>>, %arg4: memref<1x8x128xf32, #tpu.memory_space<vmem>>, %arg5: memref<1x8x128xf32, #tpu.memory_space<vmem>>) attributes {dimension_semantics = [#tpu.dimension_semantics<parallel>, #tpu.dimension_semantics<arbitrary>], iteration_bounds = array<i64: 2, 1>, scalar_prefetch = 0 : i64, scratch_operands = 0 : i64, tpu.core_type = #tpu.core_type<tc>, window_params = [{transform_indices = @transform_0, window_bounds = array<i64: 8, 128>}, {transform_indices = @transform_1, window_bounds = array<i64: 8, 128>}, {transform_indices = @transform_2, window_bounds = array<i64: 1, 8, 128>}, {transform_indices = @transform_3, window_bounds = array<i64: 1, 8, 128>}]} {
    %c1_i32 = arith.constant 1 : i32
    %0 = arith.muli %arg0, %c1_i32 : i32
    %1 = arith.addi %0, %arg1 : i32
    %c0_i32 = arith.constant 0 : i32
    %2 = arith.cmpi eq, %arg1, %c0_i32 : i32
    %3 = arith.extui %2 : i1 to i32
    %c0_i32_0 = arith.constant 0 : i32
    %4 = arith.cmpi ne, %3, %c0_i32_0 : i32
    scf.if %4 {
      %cst = arith.constant 0.000000e+00 : f32
      %18 = vector.broadcast %cst : f32 to vector<1x8x128xf32>
      %c0_7 = arith.constant 0 : index
      %c0_8 = arith.constant 0 : index
      %c0_9 = arith.constant 0 : index
      %19 = vector.load %arg4[%c0_7, %c0_8, %c0_9] : memref<1x8x128xf32, #tpu.memory_space<vmem>>, vector<1x8x128xf32>
      tpu.vector_store %arg4[%c0_7, %c0_8, %c0_9], %18 {strides = array<i32>} : memref<1x8x128xf32, #tpu.memory_space<vmem>>, vector<1x8x128xf32>,
      %cst_10 = arith.constant 0.000000e+00 : f32
      %20 = vector.broadcast %cst_10 : f32 to vector<1x8x128xf32>
      %c0_11 = arith.constant 0 : index
      %c0_12 = arith.constant 0 : index
      %c0_13 = arith.constant 0 : index
      %21 = vector.load %arg5[%c0_11, %c0_12, %c0_13] : memref<1x8x128xf32, #tpu.memory_space<vmem>>, vector<1x8x128xf32>
      tpu.vector_store %arg5[%c0_11, %c0_12, %c0_13], %20 {strides = array<i32>} : memref<1x8x128xf32, #tpu.memory_space<vmem>>, vector<1x8x128xf32>,
    } else {
    }
    %c0 = arith.constant 0 : index
    %c0_1 = arith.constant 0 : index
    %5 = vector.load %arg2[%c0, %c0_1] : memref<8x128xf32, #tpu.memory_space<vmem>>, vector<8x128xf32>
    %c0_2 = arith.constant 0 : index
    %c0_3 = arith.constant 0 : index
    %6 = vector.load %arg3[%c0_2, %c0_3] : memref<8x128xf32, #tpu.memory_space<vmem>>, vector<8x128xf32>
    %7 = math.log %5 : vector<8x128xf32>
    %8 = arith.mulf %6, %7 : vector<8x128xf32>
    %9 = math.exp %8 : vector<8x128xf32>
    %c1_i32_4 = arith.constant 1 : i32
    %10 = arith.addi %1, %c1_i32_4 : i32
    %c1024_i32 = arith.constant 1024 : i32
    %11 = arith.muli %10, %c1024_i32 : i32
    %c264_i32 = arith.constant 264 : i32
    %12 = arith.cmpi sgt, %11, %c264_i32 : i32
    %true = arith.constant true
    %13 = arith.xori %12, %true : i1
    %14 = arith.extui %13 : i1 to i32
    %c0_i32_5 = arith.constant 0 : i32
    %15 = arith.cmpi ne, %14, %c0_i32_5 : i32
    scf.if %15 {
      %c0_7 = arith.constant 0 : index
      %c0_8 = arith.constant 0 : index
      %c0_9 = arith.constant 0 : index
      %18 = vector.load %arg4[%c0_7, %c0_8, %c0_9] : memref<1x8x128xf32, #tpu.memory_space<vmem>>, vector<1x8x128xf32>
      %19 = vector.shape_cast %8 : vector<8x128xf32> to vector<1x8x128xf32>
      %cst = arith.constant dense<0.000000e+00> : vector<8x128xf32>
      %20 = vector.multi_reduction <add>, %19, %cst [0] : vector<1x8x128xf32> to vector<8x128xf32>
      %21 = vector.shape_cast %20 : vector<8x128xf32> to vector<1x8x128xf32>
      %22 = arith.addf %18, %21 : vector<1x8x128xf32>
      %c0_10 = arith.constant 0 : index
      %c0_11 = arith.constant 0 : index
      %c0_12 = arith.constant 0 : index
      %23 = vector.load %arg4[%c0_10, %c0_11, %c0_12] : memref<1x8x128xf32, #tpu.memory_space<vmem>>, vector<1x8x128xf32>
      tpu.vector_store %arg4[%c0_10, %c0_11, %c0_12], %22 {strides = array<i32>} : memref<1x8x128xf32, #tpu.memory_space<vmem>>, vector<1x8x128xf32>,
      %c0_13 = arith.constant 0 : index
      %c0_14 = arith.constant 0 : index
      %c0_15 = arith.constant 0 : index
      %24 = vector.load %arg5[%c0_13, %c0_14, %c0_15] : memref<1x8x128xf32, #tpu.memory_space<vmem>>, vector<1x8x128xf32>
      %25 = vector.shape_cast %9 : vector<8x128xf32> to vector<1x8x128xf32>
      %cst_16 = arith.constant dense<0.000000e+00> : vector<8x128xf32>
      %26 = vector.multi_reduction <add>, %25, %cst_16 [0] : vector<1x8x128xf32> to vector<8x128xf32>
      %27 = vector.shape_cast %26 : vector<8x128xf32> to vector<1x8x128xf32>
      %28 = arith.addf %24, %27 : vector<1x8x128xf32>
      %c0_17 = arith.constant 0 : index
      %c0_18 = arith.constant 0 : index
      %c0_19 = arith.constant 0 : index
      %29 = vector.load %arg5[%c0_17, %c0_18, %c0_19] : memref<1x8x128xf32, #tpu.memory_space<vmem>>, vector<1x8x128xf32>
      tpu.vector_store %arg5[%c0_17, %c0_18, %c0_19], %28 {strides = array<i32>} : memref<1x8x128xf32, #tpu.memory_space<vmem>>, vector<1x8x128xf32>,
    } else {
    }
    %16 = arith.extui %12 : i1 to i32
    %c0_i32_6 = arith.constant 0 : i32
    %17 = arith.cmpi ne, %16, %c0_i32_6 : i32
    scf.if %17 {
      %c1024_i32_7 = arith.constant 1024 : i32
      %18 = arith.muli %1, %c1024_i32_7 : i32
      %19 = tpu.iota {dimensions = array<i32: 0>} : vector<8x128xi32>
      %20 = tpu.iota {dimensions = array<i32: 1>} : vector<8x128xi32>
      %c128_i32 = arith.constant 128 : i32
      %21 = vector.broadcast %c128_i32 : i32 to vector<8x128xi32>
      %22 = arith.muli %19, %21 : vector<8x128xi32>
      %23 = vector.broadcast %18 : i32 to vector<8x128xi32>
      %24 = arith.addi %23, %22 : vector<8x128xi32>
      %25 = arith.addi %24, %20 : vector<8x128xi32>
      %c264_i32_8 = arith.constant 264 : i32
      %26 = vector.broadcast %c264_i32_8 : i32 to vector<8x128xi32>
      %27 = arith.cmpi slt, %25, %26 : vector<8x128xi32>
      %cst = arith.constant 0.000000e+00 : f32
      %28 = vector.broadcast %cst : f32 to vector<8x128xf32>
      %c0_9 = arith.constant 0 : index
      %c0_10 = arith.constant 0 : index
      %c0_11 = arith.constant 0 : index
      %29 = vector.load %arg4[%c0_9, %c0_10, %c0_11] : memref<1x8x128xf32, #tpu.memory_space<vmem>>, vector<1x8x128xf32>
      %30 = arith.select %27, %8, %28 : vector<8x128xi1>, vector<8x128xf32>
      %31 = vector.shape_cast %30 : vector<8x128xf32> to vector<1x8x128xf32>
      %cst_12 = arith.constant dense<0.000000e+00> : vector<8x128xf32>
      %32 = vector.multi_reduction <add>, %31, %cst_12 [0] : vector<1x8x128xf32> to vector<8x128xf32>
      %33 = vector.shape_cast %32 : vector<8x128xf32> to vector<1x8x128xf32>
      %34 = arith.addf %29, %33 : vector<1x8x128xf32>
      %c0_13 = arith.constant 0 : index
      %c0_14 = arith.constant 0 : index
      %c0_15 = arith.constant 0 : index
      %35 = vector.load %arg4[%c0_13, %c0_14, %c0_15] : memref<1x8x128xf32, #tpu.memory_space<vmem>>, vector<1x8x128xf32>
      tpu.vector_store %arg4[%c0_13, %c0_14, %c0_15], %34 {strides = array<i32>} : memref<1x8x128xf32, #tpu.memory_space<vmem>>, vector<1x8x128xf32>,
      %c0_16 = arith.constant 0 : index
      %c0_17 = arith.constant 0 : index
      %c0_18 = arith.constant 0 : index
      %36 = vector.load %arg5[%c0_16, %c0_17, %c0_18] : memref<1x8x128xf32, #tpu.memory_space<vmem>>, vector<1x8x128xf32>
      %37 = arith.select %27, %9, %28 : vector<8x128xi1>, vector<8x128xf32>
      %38 = vector.shape_cast %37 : vector<8x128xf32> to vector<1x8x128xf32>
      %cst_19 = arith.constant dense<0.000000e+00> : vector<8x128xf32>
      %39 = vector.multi_reduction <add>, %38, %cst_19 [0] : vector<1x8x128xf32> to vector<8x128xf32>
      %40 = vector.shape_cast %39 : vector<8x128xf32> to vector<1x8x128xf32>
      %41 = arith.addf %36, %40 : vector<1x8x128xf32>
      %c0_20 = arith.constant 0 : index
      %c0_21 = arith.constant 0 : index
      %c0_22 = arith.constant 0 : index
      %42 = vector.load %arg5[%c0_20, %c0_21, %c0_22] : memref<1x8x128xf32, #tpu.memory_space<vmem>>, vector<1x8x128xf32>
      tpu.vector_store %arg5[%c0_20, %c0_21, %c0_22], %41 {strides = array<i32>} : memref<1x8x128xf32, #tpu.memory_space<vmem>>, vector<1x8x128xf32>,
    } else {
    }
    return
  }
  func.func @transform_0(%arg0: i32, %arg1: i32) -> (i32, i32) {
    %c1_i32 = arith.constant 1 : i32
    %0 = arith.muli %arg0, %c1_i32 : i32
    %1 = arith.addi %0, %arg1 : i32
    %c0_i32 = arith.constant 0 : i32
    %2 = arith.minsi %1, %c0_i32 : i32
    %c0_i32_0 = arith.constant 0 : i32
    %c0_i32_1 = arith.constant 0 : i32
    return %2, %c0_i32_0 : i32, i32
  }
  func.func @transform_1(%arg0: i32, %arg1: i32) -> (i32, i32) {
    %c1_i32 = arith.constant 1 : i32
    %0 = arith.muli %arg0, %c1_i32 : i32
    %1 = arith.addi %0, %arg1 : i32
    %c0_i32 = arith.constant 0 : i32
    %2 = arith.minsi %1, %c0_i32 : i32
    %c0_i32_0 = arith.constant 0 : i32
    %c0_i32_1 = arith.constant 0 : i32
    return %2, %c0_i32_0 : i32, i32
  }
  func.func @transform_2(%arg0: i32, %arg1: i32) -> (i32, i32, i32) {
    %c0_i32 = arith.constant 0 : i32
    %c0_i32_0 = arith.constant 0 : i32
    %c0_i32_1 = arith.constant 0 : i32
    return %arg0, %c0_i32, %c0_i32_0 : i32, i32, i32
  }
  func.func @transform_3(%arg0: i32, %arg1: i32) -> (i32, i32, i32) {
    %c0_i32 = arith.constant 0 : i32
    %c0_i32_0 = arith.constant 0 : i32
    %c0_i32_1 = arith.constant 0 : i32
    return %arg0, %c0_i32, %c0_i32_0 : i32, i32, i32
  }
}

</mosaic_0001>

<llo_original>
// kernel: tpu_custom_call.1
$region0: #{tpu_custom_call.1}
  #allocation0 [shape = 'u32[]', space=smem, size = 0x4, offset = 0x4, fixed_abs, tag = 'smem constant byte address 0x4 - core index']
  #allocation1 [shape = 'u32[144,128]{1,0:T(1,128)}', space=vmem, size = 0x12000, scoped, tag = 'internal scratch']
  %s0 = inlined_call_operand.hbm [shape: f32[8,128], index: 0, kind: input, shape index: {}]
  %s1 = inlined_call_operand.hbm [shape: f32[8,128], index: 1, kind: input, shape index: {}]
  %s2 = inlined_call_operand.hbm [shape: f32[2,8,128], index: 2, kind: output, shape index: {0}]
  %s3 = inlined_call_operand.hbm [shape: f32[2,8,128], index: 3, kind: output, shape index: {1}]
  %4 = xla_tuple %s2, %s3
  %s5 = sld [smem:[#allocation0]]
  $region69: #{tpu_custom_call.1} parent=0
    _
  %s7 = ssub.s32 1, %s5
  %s8 = scalar_select 0, %s7, %s5
  $region1: #{tpu_custom_call.1} parent=0
    #allocation2 [shape = 'u8[8192]{0}', space=vmem, size = 0x2000, scoped, tag = 'input window, operand 0']
    #allocation3 [shape = 's32[2]{0}', space=sflag, size = 0x8, scoped, tag = 'scoped memory for tpu_custom_call.1']
    #allocation4 [shape = 's32[2]{0}', space=sflag, size = 0x8, scoped, tag = 'scoped memory for tpu_custom_call.1']
    #allocation5 [shape = 'u8[8192]{0}', space=vmem, size = 0x2000, scoped, tag = 'input window, operand 1']
    #allocation6 [shape = 's32[2]{0}', space=sflag, size = 0x8, scoped, tag = 'scoped memory for tpu_custom_call.1']
    #allocation7 [shape = 'u8[8192]{0}', space=vmem, size = 0x2000, scoped, tag = 'output window, operand 0']
    #allocation8 [shape = 'u8[8192]{0}', space=vmem, size = 0x2000, scoped, tag = 'output window, operand 1']
    #allocation9 [shape = 's32[2]{0}', space=sflag, size = 0x8, scoped, tag = 'scoped memory for tpu_custom_call.1']
    %9 = vsyncpa [#allocation3], 0
    %s10 = scalar_lea.sflag [#allocation3], 1
    %11 = vsyncpa %s10, 0
    %12 = vsyncpa [#allocation6], 0
    %s13 = scalar_lea.sflag [#allocation6], 1
    %14 = vsyncpa %s13, 0
    %15 = vsyncpa [#allocation4], 0
    %s16 = scalar_lea.sflag [#allocation4], 1
    %17 = vsyncpa %s16, 0
    %18 = vsyncpa [#allocation9], 0
    %s19 = scalar_lea.sflag [#allocation9], 1
    %20 = vsyncpa %s19, 0
    loop: start=0, step=1, limit=4
    $region2: #{tpu_custom_call.1} parent=1 // loop_pre_header
      _
    $region3: #{tpu_custom_call.1} parent=1 // loop_header
      %s22 = sphi 0, %s26
      %p23 = scmp.ge.s32.totalorder %s22, 4
      %s29 = sphi 0, %s41
      %s30 = sphi 0, %s37
      %s31 = sphi 0, %s29
      %s32 = sphi 0, %s30
      %s33 = sphi 0, %s31
      %s34 = sphi 0, %s32
      %s50 = sphi 0, %s52
      %s53 = sphi 0, %s50
      %s54 = sphi 0, %s53
      %s70 = sphi 0, %s54
      %s82 = sphi 0, %s84
      %s85 = sphi 0, %s82
      %s86 = sphi 0, %s85
      %s102 = sphi 0, %s86
      %s108 = sphi 0, %s110
      %s111 = sphi 0, %s108
      %s112 = sphi 0, %s111
      %s128 = sphi 0, %s112
      %s134 = sphi 0, %s136
      %s137 = sphi 0, %s134
      %s138 = sphi 0, %s137
      %s154 = sphi 0, %s138
    $region4: #{tpu_custom_call.1} parent=1 // loop_header_branch
      %25 = sbr.rel (%p23) target = $region8
    $region5: #{tpu_custom_call.1} parent=1 // loop_body
      %s27 = ssub.s32 %s22, 1
      %s28 = ssub.s32 %s22, 2
      %s35 = sadd.s32 1, %s30
      %p36 = scmp.ge.s32.totalorder %s35, 1
      %s37 = scalar_select %p36, 0, %s35
      %s38 = sadd.s32 1, %s29
      %s39 = scalar_select %p36, %s38, %s29
      %p40 = scmp.ge.s32.totalorder %s39, 2
      %s41 = scalar_select %p40, 0, %s39
      %s42 = sadd.s32 %s29, %s30
      %p43 = scmp.lt.s32.totalorder %s42, 0
      %s44 = scalar_select %p43, %s42, 0
      %s45 = sadd.s32 %s41, %s37
      %p46 = scmp.lt.s32.totalorder %s45, 0
      %s47 = scalar_select %p46, %s45, 0
      %s48 = ssub.s32 %s44, %s47
      %p49 = scmp.eq.s32.totalorder %s48, 0
      %s51 = sadd.s32 %s50, 1
      %s52 = scalar_select %p49, %s50, %s51
      %p55 = pneg %p49
      %p56 = scmp.eq.s32.totalorder %s22, 1
      %p57 = por %p55, %p56
      %p58 = scmp.ne.s32.totalorder %s50, %s53
      %p59 = scmp.eq.s32.totalorder %s22, 0
      %p60 = por %p58, %p59
      %p61 = scmp.ne.s32.totalorder %s50, %s53
      %p62 = scmp.eq.s32.totalorder %s27, 1
      %p63 = por %p61, %p62
      %p64 = scmp.ne.s32.totalorder %s53, %s54
      %p65 = scmp.eq.s32.totalorder %s27, 0
      %p66 = por %p64, %p65
      %p67 = scmp.ne.s32.totalorder %s53, %s54
      %p68 = scmp.eq.s32.totalorder %s28, 1
      %p69 = por %p67, %p68
      %p71 = scmp.ne.s32.totalorder %s54, %s70
      %p72 = scmp.eq.s32.totalorder %s28, 0
      %p73 = por %p71, %p72
      %s74 = sadd.s32 %s29, %s30
      %p75 = scmp.lt.s32.totalorder %s74, 0
      %s76 = scalar_select %p75, %s74, 0
      %s77 = sadd.s32 %s41, %s37
      %p78 = scmp.lt.s32.totalorder %s77, 0
      %s79 = scalar_select %p78, %s77, 0
      %s80 = ssub.s32 %s76, %s79
      %p81 = scmp.eq.s32.totalorder %s80, 0
      %s83 = sadd.s32 %s82, 1
      %s84 = scalar_select %p81, %s82, %s83
      %p87 = pneg %p81
      %p88 = scmp.eq.s32.totalorder %s22, 1
      %p89 = por %p87, %p88
      %p90 = scmp.ne.s32.totalorder %s82, %s85
      %p91 = scmp.eq.s32.totalorder %s22, 0
      %p92 = por %p90, %p91
      %p93 = scmp.ne.s32.totalorder %s82, %s85
      %p94 = scmp.eq.s32.totalorder %s27, 1
      %p95 = por %p93, %p94
      %p96 = scmp.ne.s32.totalorder %s85, %s86
      %p97 = scmp.eq.s32.totalorder %s27, 0
      %p98 = por %p96, %p97
      %p99 = scmp.ne.s32.totalorder %s85, %s86
      %p100 = scmp.eq.s32.totalorder %s28, 1
      %p101 = por %p99, %p100
      %p103 = scmp.ne.s32.totalorder %s86, %s102
      %p104 = scmp.eq.s32.totalorder %s28, 0
      %p105 = por %p103, %p104
      %s106 = ssub.s32 %s29, %s41
      %p107 = scmp.eq.s32.totalorder %s106, 0
      %s109 = sadd.s32 %s108, 1
      %s110 = scalar_select %p107, %s108, %s109
      %p113 = pneg %p107
      %p114 = scmp.eq.s32.totalorder %s22, 1
      %p115 = por %p113, %p114
      %p116 = scmp.ne.s32.totalorder %s108, %s111
      %p117 = scmp.eq.s32.totalorder %s22, 0
      %p118 = por %p116, %p117
      %p119 = scmp.ne.s32.totalorder %s108, %s111
      %p120 = scmp.eq.s32.totalorder %s27, 1
      %p121 = por %p119, %p120
      %p122 = scmp.ne.s32.totalorder %s111, %s112
      %p123 = scmp.eq.s32.totalorder %s27, 0
      %p124 = por %p122, %p123
      %p125 = scmp.ne.s32.totalorder %s111, %s112
      %p126 = scmp.eq.s32.totalorder %s28, 1
      %p127 = por %p125, %p126
      %p129 = scmp.ne.s32.totalorder %s112, %s128
      %p130 = scmp.eq.s32.totalorder %s28, 0
      %p131 = por %p129, %p130
      %s132 = ssub.s32 %s29, %s41
      %p133 = scmp.eq.s32.totalorder %s132, 0
      %s135 = sadd.s32 %s134, 1
      %s136 = scalar_select %p133, %s134, %s135
      %p139 = pneg %p133
      %p140 = scmp.eq.s32.totalorder %s22, 1
      %p141 = por %p139, %p140
      %p142 = scmp.ne.s32.totalorder %s134, %s137
      %p143 = scmp.eq.s32.totalorder %s22, 0
      %p144 = por %p142, %p143
      %p145 = scmp.ne.s32.totalorder %s134, %s137
      %p146 = scmp.eq.s32.totalorder %s27, 1
      %p147 = por %p145, %p146
      %p148 = scmp.ne.s32.totalorder %s137, %s138
      %p149 = scmp.eq.s32.totalorder %s27, 0
      %p150 = por %p148, %p149
      %p151 = scmp.ne.s32.totalorder %s137, %s138
      %p152 = scmp.eq.s32.totalorder %s28, 1
      %p153 = por %p151, %p152
      %p155 = scmp.ne.s32.totalorder %s138, %s154
      %p156 = scmp.eq.s32.totalorder %s28, 0
      %p157 = por %p155, %p156
      %p158 = scmp.le.s32.totalorder 1, %s22
      %p159 = scmp.lt.s32.totalorder %s22, 3
      %p160 = pnand %p158, %p159
      %p161 = pneg %p160
      // Predicated region
      $region9: #{tpu_custom_call.1} parent=5 // pred_check
        _
      $region10: #{tpu_custom_call.1} parent=5 // pred_check_branch
        %163 = sbr.rel (%p160) target = $region12
      $region11: #{tpu_custom_call.1} parent=5 // pred_region
        %s164 = ssub.s32 %s22, 1
      $region12: #{tpu_custom_call.1} parent=5 // pred_fallthru
        _
      %p165 = scmp.lt.s32.totalorder %s22, 2
      // Predicated region
      $region13: #{tpu_custom_call.1} parent=5 // pred_check
        %p166 = pneg %p165
      $region14: #{tpu_custom_call.1} parent=5 // pred_check_branch
        %168 = sbr.rel (%p166) target = $region16
      $region15: #{tpu_custom_call.1} parent=5 // pred_region
        // Predicated region
        $region17: #{tpu_custom_call.1} parent=15 // pred_check
          %p169 = pneg %p60
        $region18: #{tpu_custom_call.1} parent=15 // pred_check_branch
          %171 = sbr.rel (%p169) target = $region20
        $region19: #{tpu_custom_call.1} parent=15 // pred_region
          %s172 = sand.u32 %s50, 1
          %s173 = scalar_lea.sflag [#allocation3], %s172
          %s174 = sand.u32 %s50, 1
          %s175 = smul.addr %s174, 8
          %s176 = scalar_lea.vmem [#allocation2], %s175
          %s177 = sadd.s32 %s29, %s30
          %p178 = scmp.lt.s32.totalorder %s177, 0
          %s179 = scalar_select %p178, %s177, 0
          %s181 = ssub.s32 128, 128
          %182 = vsyncadd %s173, %s181
          %s183 = smul.addr %s179, 128
          %s184 = scalar_lea.hbm %s0, %s183
          %s186 = sshll.u32 %s176, 4
          %s187 = int_to_ptr.vmem [resolvable:$true] %s186
          %189 = dma.hbm_to_vmem [thread:$0]  %s184, 128, %s187, %s173
        $region20: #{tpu_custom_call.1} parent=15 // pred_fallthru
          _
        // Predicated region
        $region21: #{tpu_custom_call.1} parent=15 // pred_check
          %p190 = pneg %p92
        $region22: #{tpu_custom_call.1} parent=15 // pred_check_branch
          %192 = sbr.rel (%p190) target = $region24
        $region23: #{tpu_custom_call.1} parent=15 // pred_region
          %s193 = sand.u32 %s82, 1
          %s194 = scalar_lea.sflag [#allocation6], %s193
          %s195 = sand.u32 %s82, 1
          %s196 = smul.addr %s195, 8
          %s197 = scalar_lea.vmem [#allocation5], %s196
          %s198 = sadd.s32 %s29, %s30
          %p199 = scmp.lt.s32.totalorder %s198, 0
          %s200 = scalar_select %p199, %s198, 0
          %s202 = ssub.s32 128, 128
          %203 = vsyncadd %s194, %s202
          %s204 = smul.addr %s200, 128
          %s205 = scalar_lea.hbm %s1, %s204
          %s207 = sshll.u32 %s197, 4
          %s208 = int_to_ptr.vmem [resolvable:$true] %s207
          %210 = dma.hbm_to_vmem [thread:$0]  %s205, 128, %s208, %s194
        $region24: #{tpu_custom_call.1} parent=15 // pred_fallthru
          _
      $region16: #{tpu_custom_call.1} parent=5 // pred_fallthru
        _
      %p211 = scmp.le.s32.totalorder 1, %s22
      %p212 = scmp.lt.s32.totalorder %s22, 3
      %p213 = pnand %p211, %p212
      %p214 = pneg %p213
      // Predicated region
      $region25: #{tpu_custom_call.1} parent=5 // pred_check
        _
      $region26: #{tpu_custom_call.1} parent=5 // pred_check_branch
        %216 = sbr.rel (%p213) target = $region28
      $region27: #{tpu_custom_call.1} parent=5 // pred_region
        %s217 = ssub.s32 %s22, 1
        %s218 = sand.u32 %s53, 1
        %s219 = scalar_lea.sflag [#allocation3], %s218
        %s220 = sand.u32 %s53, 1
        %s221 = smul.addr %s220, 8
        %s222 = scalar_lea.vmem [#allocation2], %s221
        // Predicated region
        $region29: #{tpu_custom_call.1} parent=27 // pred_check
          %p223 = pneg %p66
        $region30: #{tpu_custom_call.1} parent=27 // pred_check_branch
          %225 = sbr.rel (%p223) target = $region32
        $region31: #{tpu_custom_call.1} parent=27 // pred_region
          %226 = dma.done %s219, 128
        $region32: #{tpu_custom_call.1} parent=27 // pred_fallthru
          _
        %s227 = sand.u32 %s85, 1
        %s228 = scalar_lea.sflag [#allocation6], %s227
        %s229 = sand.u32 %s85, 1
        %s230 = smul.addr %s229, 8
        %s231 = scalar_lea.vmem [#allocation5], %s230
        // Predicated region
        $region33: #{tpu_custom_call.1} parent=27 // pred_check
          %p232 = pneg %p98
        $region34: #{tpu_custom_call.1} parent=27 // pred_check_branch
          %234 = sbr.rel (%p232) target = $region36
        $region35: #{tpu_custom_call.1} parent=27 // pred_region
          %235 = dma.done %s228, 128
        $region36: #{tpu_custom_call.1} parent=27 // pred_fallthru
          _
        %s236 = sand.u32 %s53, 1
        %s237 = scalar_lea.sflag [#allocation3], %s236
        %s238 = sand.u32 %s53, 1
        %s239 = smul.addr %s238, 8
        %s240 = scalar_lea.vmem [#allocation2], %s239
        %p241 = pneg %p66
        %p242 = pneg %p63
        %s243 = sand.u32 %s85, 1
        %s244 = scalar_lea.sflag [#allocation6], %s243
        %s245 = sand.u32 %s85, 1
        %s246 = smul.addr %s245, 8
        %s247 = scalar_lea.vmem [#allocation5], %s246
        %p248 = pneg %p98
        %p249 = pneg %p95
        %p250 = pneg %p124
        %p251 = pneg %p121
        %s252 = sand.u32 %s111, 1
        %s253 = scalar_lea.sflag [#allocation4], %s252
        %s254 = sand.u32 %s111, 1
        %s255 = smul.addr %s254, 8
        %s256 = scalar_lea.vmem [#allocation7], %s255
        %p257 = pneg %p150
        %p258 = pneg %p147
        %s259 = sand.u32 %s137, 1
        %s260 = scalar_lea.sflag [#allocation9], %s259
        %s261 = sand.u32 %s137, 1
        %s262 = smul.addr %s261, 8
        %s263 = scalar_lea.vmem [#allocation8], %s262
        %s264 = sadd.s32 %s31, %s32
        %p265 = scmp.lt.s32.totalorder %s264, 0
        %s266 = scalar_select %p265, %s264, 0
        %s267 = sadd.s32 %s31, %s32
        %p268 = scmp.lt.s32.totalorder %s267, 0
        %s269 = scalar_select %p268, %s267, 0
        %s270 = sadd.s32 %s31, %s32
        %p271 = scmp.eq.s32.totalorder %s32, 0
        // Predicated region
        $region37: #{tpu_custom_call.1} parent=27 // pred_check
          %p272 = pneg %p271
        $region38: #{tpu_custom_call.1} parent=27 // pred_check_branch
          %274 = sbr.rel (%p272) target = $region40
        $region39: #{tpu_custom_call.1} parent=27 // pred_region
          %275 = vst [vmem:[%s256] sm:$0xff] 0.0
          %276 = vst [vmem:[%s263] sm:$0xff] 0.0
        $region40: #{tpu_custom_call.1} parent=27 // pred_fallthru
          _
        %v277 = vld [vmem:[%s222] sm:$0xff]
        %v278 = vld [vmem:[%s231] sm:$0xff]
        %v279 = vlog2.pop %v277
        %v280 = vmul.f32 %v279, 0.6931472
        %v281 = vmul.f32 %v278, %v280
        %v282 = vmul.f32 %v281, 1.442695
        %v283 = vpow.pop %v282
        %s284 = sadd.s32 %s270, 1
        %s285 = smul.u32 %s284, 1024
        %p286 = scmp.gt.s32.totalorder %s285, 264
        %p287 = scmp.le.s32.totalorder %s285, 264
        // Predicated region
        $region41: #{tpu_custom_call.1} parent=27 // pred_check
          %p288 = pneg %p287
        $region42: #{tpu_custom_call.1} parent=27 // pred_check_branch
          %290 = sbr.rel (%p288) target = $region44
        $region43: #{tpu_custom_call.1} parent=27 // pred_region
          %v291 = vld [vmem:[%s256] sm:$0xff]
          %v292 = vadd.f32 %v281, 0.0
          %v293 = vadd.f32 %v291, %v292
          %294 = vst [vmem:[%s256] sm:$0xff] %v293
          %v295 = vld [vmem:[%s263] sm:$0xff]
          %v296 = vadd.f32 %v283, 0.0
          %v297 = vadd.f32 %v295, %v296
          %298 = vst [vmem:[%s263] sm:$0xff] %v297
        $region44: #{tpu_custom_call.1} parent=27 // pred_fallthru
          _
        // Predicated region
        $region45: #{tpu_custom_call.1} parent=27 // pred_check
          %p299 = pneg %p286
        $region46: #{tpu_custom_call.1} parent=27 // pred_check_branch
          %301 = sbr.rel (%p299) target = $region48
        $region47: #{tpu_custom_call.1} parent=27 // pred_region
          %s302 = smul.u32 %s270, 1024
          %v303 = vlaneseq
          %v304 = vshrl.u32 %v303, 7
          %v305 = vlaneseq
          %v306 = vand.u32 %v305, 127
          %v307 = vmul.u32 %v304, 128
          %v308 = vstv %s302
          %v309 = vadd.s32 %v308, %v307
          %v310 = vadd.s32 %v309, %v306
          %vm311 = vcmp.lt.s32.totalorder %v310, 264
          %v312 = vld [vmem:[%s256] sm:$0xff]
          %v313 = vsel %vm311, %v281, 0.0
          %v314 = vadd.f32 %v313, 0.0
          %v315 = vadd.f32 %v312, %v314
          %316 = vst [vmem:[%s256] sm:$0xff] %v315
          %v317 = vld [vmem:[%s263] sm:$0xff]
          %v318 = vsel %vm311, %v283, 0.0
          %v319 = vadd.f32 %v318, 0.0
          %v320 = vadd.f32 %v317, %v319
          %321 = vst [vmem:[%s263] sm:$0xff] %v320
        $region48: #{tpu_custom_call.1} parent=27 // pred_fallthru
          _
        %s322 = sand.u32 %s111, 1
        %s323 = scalar_lea.sflag [#allocation4], %s322
        %s324 = sand.u32 %s111, 1
        %s325 = smul.addr %s324, 8
        %s326 = scalar_lea.vmem [#allocation7], %s325
        %s327 = sand.u32 %s137, 1
        %s328 = scalar_lea.sflag [#allocation9], %s327
        %s329 = sand.u32 %s137, 1
        %s330 = smul.addr %s329, 8
        %s331 = scalar_lea.vmem [#allocation8], %s330
        // Predicated region
        $region49: #{tpu_custom_call.1} parent=27 // pred_check
          %p332 = pneg %p121
        $region50: #{tpu_custom_call.1} parent=27 // pred_check_branch
          %334 = sbr.rel (%p332) target = $region52
        $region51: #{tpu_custom_call.1} parent=27 // pred_region
          %s336 = ssub.s32 128, 128
          %337 = vsyncadd %s323, %s336
          %s338 = smul.addr %s31, 128
          %s339 = scalar_lea.hbm %s2, %s338
          %s341 = sshll.u32 %s326, 4
          %s342 = int_to_ptr.vmem [resolvable:$true] %s341
          %344 = dma.vmem_to_hbm [thread:$0]  %s342, 128, %s339, %s323
        $region52: #{tpu_custom_call.1} parent=27 // pred_fallthru
          _
        // Predicated region
        $region53: #{tpu_custom_call.1} parent=27 // pred_check
          %p345 = pneg %p147
        $region54: #{tpu_custom_call.1} parent=27 // pred_check_branch
          %347 = sbr.rel (%p345) target = $region56
        $region55: #{tpu_custom_call.1} parent=27 // pred_region
          %s349 = ssub.s32 128, 128
          %350 = vsyncadd %s328, %s349
          %s351 = smul.addr %s31, 128
          %s352 = scalar_lea.hbm %s3, %s351
          %s354 = sshll.u32 %s331, 4
          %s355 = int_to_ptr.vmem [resolvable:$true] %s354
          %357 = dma.vmem_to_hbm [thread:$0]  %s355, 128, %s352, %s328
        $region56: #{tpu_custom_call.1} parent=27 // pred_fallthru
          _
      $region28: #{tpu_custom_call.1} parent=5 // pred_fallthru
        _
      %p358 = scmp.le.s32.totalorder 2, %s22
      // Predicated region
      $region57: #{tpu_custom_call.1} parent=5 // pred_check
        %p359 = pneg %p358
      $region58: #{tpu_custom_call.1} parent=5 // pred_check_branch
        %361 = sbr.rel (%p359) target = $region60
      $region59: #{tpu_custom_call.1} parent=5 // pred_region
        %s362 = ssub.s32 %s22, 2
        // Predicated region
        $region61: #{tpu_custom_call.1} parent=59 // pred_check
          %p363 = pneg %p127
        $region62: #{tpu_custom_call.1} parent=59 // pred_check_branch
          %365 = sbr.rel (%p363) target = $region64
        $region63: #{tpu_custom_call.1} parent=59 // pred_region
          %s366 = sand.u32 %s112, 1
          %s367 = scalar_lea.sflag [#allocation4], %s366
          %s368 = sand.u32 %s112, 1
          %s369 = smul.addr %s368, 8
          %s370 = scalar_lea.vmem [#allocation7], %s369
          %371 = dma.done %s367, 128
        $region64: #{tpu_custom_call.1} parent=59 // pred_fallthru
          _
        // Predicated region
        $region65: #{tpu_custom_call.1} parent=59 // pred_check
          %p372 = pneg %p153
        $region66: #{tpu_custom_call.1} parent=59 // pred_check_branch
          %374 = sbr.rel (%p372) target = $region68
        $region67: #{tpu_custom_call.1} parent=59 // pred_region
          %s375 = sand.u32 %s138, 1
          %s376 = scalar_lea.sflag [#allocation9], %s375
          %s377 = sand.u32 %s138, 1
          %s378 = smul.addr %s377, 8
          %s379 = scalar_lea.vmem [#allocation8], %s378
          %380 = dma.done %s376, 128
        $region68: #{tpu_custom_call.1} parent=59 // pred_fallthru
          _
      $region60: #{tpu_custom_call.1} parent=5 // pred_fallthru
        _
    $region6: #{tpu_custom_call.1} parent=1 // loop_footer
      %s26 = sadd.s32 1, %s22
    $region7: #{tpu_custom_call.1} parent=1 // loop_footer_branch
      %21 = sbr.rel target = $region3
    $region8: #{tpu_custom_call.1} parent=1 // loop_exit
      _
    %381 = vsyncpa [#allocation3], 1
    %s382 = scalar_lea.sflag [#allocation3], 1
    %383 = vsyncpa %s382, 1
    %384 = vsyncpa [#allocation6], 1
    %s385 = scalar_lea.sflag [#allocation6], 1
    %386 = vsyncpa %s385, 1
    %387 = vsyncpa [#allocation4], 1
    %s388 = scalar_lea.sflag [#allocation4], 1
    %389 = vsyncpa %s388, 1
    %390 = vsyncpa [#allocation9], 1
    %s391 = scalar_lea.sflag [#allocation9], 1
    %392 = vsyncpa %s391, 1

</llo_original>
